<compile_context>
chip_gen: v5e
topology: v5e:2x2
jax: 0.10.0
libtpu: 0.0.40
codegen_flags: <defaults>
</compile_context>

<pallas_src>
import numpy as np
import jax
import jax.numpy as jnp
from jax.experimental import pallas as pl
from jax.experimental.pallas import tpu as pltpu


def _round_up(n, m):
    return ((n + m - 1) // m) * m


# ----------------------------- Pallas kernel --------------------------------
def _critic_kernel(s_ref, a_ref, w1s_ref, w1a_ref, b12_ref, w2_ref, w3_ref,
                   b3_ref, q_ref):
    """Fused twin-critic MLP on one (TB, ...) batch tile.

    s_ref   : [TB, s_dim]   state tile (cast to the weight dtype in-kernel)
    a_ref   : [TB, a_dim]   action tile
    w1s_ref : [s_dim, 2H]   state rows of [W1_c1 || W1_c2]
    w1a_ref : [a_dim, 2H]   action rows of [W1_c1 || W1_c2]
    b12_ref : [2, 2H]       row 0 = fused b1, row 1 = fused b2   (f32)
    w2_ref  : [2H, 2H]      block-diagonal(W2_c1, W2_c2)
    w3_ref  : [2H, 2]       [[W3_c1, 0], [0, W3_c2]]
    b3_ref  : [1, 2]        (b3_c1, b3_c2)                       (f32)
    q_ref   : [TB, 2]       column 0 = q1, column 1 = q2         (f32)
    """
    wdt = w1s_ref.dtype                         # MXU operand dtype (bf16 default)
    s = s_ref[...].astype(wdt)
    a = a_ref[...].astype(wdt)
    b12 = b12_ref[...]                          # [2, 2H] f32
    b1 = b12[0:1, :]
    b2 = b12[1:2, :]

    # layer 1: s @ W1_s + a @ W1_a  (f32 accumulation), bias + tanh in f32
    h = jnp.dot(s, w1s_ref[...], preferred_element_type=jnp.float32)
    h = h + jnp.dot(a, w1a_ref[...], preferred_element_type=jnp.float32)
    h = jnp.tanh(h + b1)

    # layer 2: block-diagonal W2 keeps the two critics independent
    h = jnp.tanh(
        jnp.dot(h.astype(wdt), w2_ref[...], preferred_element_type=jnp.float32)
        + b2)

    # output layer: [TB, 2H] @ [2H, 2]
    q_ref[...] = (
        jnp.dot(h.astype(wdt), w3_ref[...], preferred_element_type=jnp.float32)
        + b3_ref[...])


# ------------------------------ host wrapper ---------------------------------
def critic_forward(s, a, fused, *, block_b=4096):
    """Twin-Q forward. s: [B, S1, S2] (last two dims flattened), a: [B, a_dim].

    `fused` comes from pack_critic_params(). Returns (q1, q2), each [B, 1] f32.
    """
    s = jnp.asarray(s)
    a = jnp.asarray(a)
    if s.ndim >= 2:
        # torch: s.flatten(s.ndim - 2, -1) — contiguous merge, free in XLA
        s = s.reshape(s.shape[:-2] + (s.shape[-2] * s.shape[-1],))

    w1s, w1a, b12, w2, w3, b3 = (fused["w1_s"], fused["w1_a"], fused["b12"],
                                 fused["w2"], fused["w3"], fused["b3"])
    B, s_dim = s.shape
    a_dim = a.shape[-1]
    H2 = w2.shape[0]
    nq = w3.shape[1]                            # = 2 (twin Q)

    # ---- batch-tile selection & VMEM budget ---------------------------------
    lane = 128
    bytes_per_row = (_round_up(s_dim, lane) * s.dtype.itemsize
                     + _round_up(a_dim, lane) * a.dtype.itemsize
                     + _round_up(nq, lane) * 4)               # out tile is f32
    weight_bytes = 2 * sum(int(w.size) * w.dtype.itemsize      # double-buffered
                           for w in (w1s, w1a, b12, w2, w3, b3))
    vmem_budget = 40 << 20                      # headroom under v7x 64 MiB VMEM
    tb_cap = max(8, ((vmem_budget - weight_bytes) // (2 * bytes_per_row)) // 8 * 8)

    if B <= 8:
        TB = B                                  # one block, equals full batch dim
    else:
        # Keep >= 2 grid steps so ("parallel",) can shard the batch across
        # v7x's two TensorCores even when B <= block_b; cap by VMEM budget.
        TB = min(block_b, _round_up(max(B // 2, 1), 8), tb_cap)
        TB = max(TB, 8)
    grid = (pl.cdiv(B, TB),)                    # partial tail block is masked

    vmem_needed = 2 * TB * bytes_per_row + weight_bytes + (1 << 20)
    vmem_limit = int(min(max(vmem_needed, 16 << 20), 48 << 20))

    out = pl.pallas_call(
        _critic_kernel,
        out_shape=jax.ShapeDtypeStruct((B, nq), jnp.float32),
        grid_spec=pltpu.PrefetchScalarGridSpec(
            num_scalar_prefetch=0,
            grid=grid,
            in_specs=[
                # activations: streamed per batch tile (double-buffered DMA)
                pl.BlockSpec((TB, s_dim), lambda i: (i, 0)),
                pl.BlockSpec((TB, a_dim), lambda i: (i, 0)),
                # packed params: constant index maps -> stay VMEM-resident
                pl.BlockSpec((s_dim, H2), lambda i: (0, 0)),
                pl.BlockSpec((a_dim, H2), lambda i: (0, 0)),
                pl.BlockSpec((2, H2), lambda i: (0, 0)),
                pl.BlockSpec((H2, H2), lambda i: (0, 0)),
                pl.BlockSpec((H2, nq), lambda i: (0, 0)),
                pl.BlockSpec((1, nq), lambda i: (0, 0)),
            ],
            out_specs=pl.BlockSpec((TB, nq), lambda i: (i, 0)),
        ),
        compiler_params=pltpu.CompilerParams(
            dimension_semantics=("parallel",),   # batch axis: megacore-shardable
            vmem_limit_bytes=vmem_limit,
        ),
    )(s, a, w1s, w1a, b12, w2, w3, b3)

    return out[:, 0:1], out[:, 1:2]


# ---------------------------- parameter packing ------------------------------
def pack_critic_params(params, s_dim, dtype=jnp.bfloat16):
    """Fuse per-critic [in,out] weights into the packed layout the kernel uses.

    bf16 is the default MXU-operand dtype (native MXU rate on all generations);
    accumulation, bias add and tanh remain f32 inside the kernel.  Use
    dtype=jnp.float32 when bit-tight agreement with the f32 reference is needed.
    W1 is split at row s_dim into state/action parts so the kernel never needs a
    concatenated input.
    """
    H = params["w1a"].shape[1]                  # per-critic hidden width (64)
    H2 = 2 * H

    w1 = jnp.concatenate([params["w1a"], params["w1b"]], axis=1)   # [d_in, 2H]
    w1_s = w1[:s_dim, :]                                           # [s_dim, 2H]
    w1_a = w1[s_dim:, :]                                           # [a_dim, 2H]

    w2 = jnp.zeros((H2, H2), jnp.float32)
    w2 = w2.at[:H, :H].set(params["w2a"])
    w2 = w2.at[H:, H:].set(params["w2b"])                          # block-diag

    w3 = jnp.zeros((H2, 2), jnp.float32)
    w3 = w3.at[:H, 0:1].set(params["w3a"])
    w3 = w3.at[H:, 1:2].set(params["w3b"])

    b1 = jnp.concatenate([params["b1a"], params["b1b"]], axis=1)   # [1, 2H]
    b2 = jnp.concatenate([params["b2a"], params["b2b"]], axis=1)   # [1, 2H]
    b12 = jnp.concatenate([b1, b2], axis=0).astype(jnp.float32)    # [2, 2H]
    b3 = jnp.concatenate([params["b3a"], params["b3b"]], axis=1).astype(jnp.float32)

    return {
        "w1_s": w1_s.astype(dtype),
        "w1_a": w1_a.astype(dtype),
        "b12": b12,
        "w2": w2.astype(dtype),
        "w3": w3.astype(dtype),
        "b3": b3,
    }


# ------------------------- deterministic param init --------------------------
def _orthogonal(key, shape, gain=1.0):
    # shape = (out_features, in_features)  (PyTorch Linear convention)
    rows, cols = shape
    n = max(rows, cols)
    a = jax.random.normal(key, (n, n), dtype=jnp.float32)
    q, r = jnp.linalg.qr(a)
    d = jnp.diag(r)
    q = q * jnp.where(d >= 0, 1.0, -1.0)   # sign fix
    return gain * q[:rows, :cols]


def init_critic_params(key, s_dim, a_dim, hidden=64):
    d_in = s_dim + a_dim
    keys = jax.random.split(key, 12)
    params = {}
    for idx, tag in enumerate(("a", "b")):  # "a" -> c1, "b" -> c2
        k = keys[idx * 6:(idx + 1) * 6]
        w1 = _orthogonal(k[0], (hidden, d_in))     # [out, in]
        w2 = _orthogonal(k[1], (hidden, hidden))
        w3 = _orthogonal(k[2], (1, hidden))
        # PyTorch Linear bias default init: U(-1/sqrt(fan_in), 1/sqrt(fan_in))
        b1 = jax.random.uniform(k[3], (1, hidden), jnp.float32,
                                -1.0 / np.sqrt(d_in), 1.0 / np.sqrt(d_in))
        b2 = jax.random.uniform(k[4], (1, hidden), jnp.float32,
                                -1.0 / np.sqrt(hidden), 1.0 / np.sqrt(hidden))
        b3 = jax.random.uniform(k[5], (1, 1), jnp.float32,
                                -1.0 / np.sqrt(hidden), 1.0 / np.sqrt(hidden))
        params[f"w1{tag}"] = w1.T                  # store [in, out]
        params[f"w2{tag}"] = w2.T
        params[f"w3{tag}"] = w3.T
        params[f"b1{tag}"] = b1
        params[f"b2{tag}"] = b2
        params[f"b3{tag}"] = b3
    return params


# ----------------------------- reference (JAX) --------------------------------
def critic_ref(s, a, params):
    s = jnp.asarray(s, jnp.float32)
    a = jnp.asarray(a, jnp.float32)
    if s.ndim >= 2:
        s = s.reshape(s.shape[:-2] + (s.shape[-2] * s.shape[-1],))
    x = jnp.concatenate((s, a), axis=-1)

    def cnet(tag):
        h = jnp.tanh(x @ params[f"w1{tag}"] + params[f"b1{tag}"])
        h = jnp.tanh(h @ params[f"w2{tag}"] + params[f"b2{tag}"])
        return h @ params[f"w3{tag}"] + params[f"b3{tag}"]

    return cnet("a"), cnet("b")


if __name__ == "__main__":
    # Small shapes consistent with the module: s has two trailing dims that get
    # flattened (s_dim = S1*S2), a is a flat action vector, hidden = 64.
    B, S1, S2, A = 2, 6, 8, 5          # s_dim = 48, a_dim = 5
    s_dim = S1 * S2

    key = jax.random.PRNGKey(0)
    k_s, k_a, k_p, k_s2, k_a2 = jax.random.split(key, 5)
    s = jax.random.normal(k_s, (B, S1, S2), dtype=jnp.float32)
    a = jax.random.normal(k_a, (B, A), dtype=jnp.float32)

    params = init_critic_params(k_p, s_dim, A, hidden=64)
    r1, r2 = critic_ref(s, a, params)

    # --- f32 packing: tight-tolerance check (small batch, single block) ---
    fused_f32 = pack_critic_params(params, s_dim, dtype=jnp.float32)
    q1, q2 = critic_forward(s, a, fused_f32)
    q1 = jax.block_until_ready(q1)
    q2 = jax.block_until_ready(q2)
    np.testing.assert_allclose(np.asarray(q1), np.asarray(r1), rtol=1e-5, atol=1e-5)
    np.testing.assert_allclose(np.asarray(q2), np.asarray(r2), rtol=1e-5, atol=1e-5)
    assert q1.shape == (B, 1) and q2.shape == (B, 1)

    # --- larger batch, non-multiple of the tile: exercises the batch grid,
    #     weight residency and the masked partial tail block (f32, tight) ---
    B2 = 300
    s2 = jax.random.normal(k_s2, (B2, S1, S2), dtype=jnp.float32)
    a2 = jax.random.normal(k_a2, (B2, A), dtype=jnp.float32)
    g1, g2 = critic_ref(s2, a2, params)

    p1, p2 = critic_forward(s2, a2, fused_f32, block_b=128)   # grid = (3,)
    p1 = jax.block_until_ready(p1)
    p2 = jax.block_until_ready(p2)
    np.testing.assert_allclose(np.asarray(p1), np.asarray(g1), rtol=1e-5, atol=1e-5)
    np.testing.assert_allclose(np.asarray(p2), np.asarray(g2), rtol=1e-5, atol=1e-5)
    assert p1.shape == (B2, 1) and p2.shape == (B2, 1)

    # --- default bf16 packing (production path): looser tolerance ---
    fused_bf16 = pack_critic_params(params, s_dim)            # bf16 default
    t1, t2 = critic_forward(s2, a2, fused_bf16)               # TB = 152, grid = (2,)
    t1 = jax.block_until_ready(t1)
    t2 = jax.block_until_ready(t2)
    np.testing.assert_allclose(np.asarray(t1), np.asarray(g1), rtol=6e-2, atol=6e-2)
    np.testing.assert_allclose(np.asarray(t2), np.asarray(g2), rtol=6e-2, atol=6e-2)
    assert t1.shape == (B2, 1) and t2.shape == (B2, 1)

    print("KERNEL_OK")
</pallas_src>

<mosaic_0001>
module attributes {stable_mosaic.version = 11 : i64} {
  func.func @_critic_kernel(%arg0: i32, %arg1: memref<2x48xf32, #tpu.memory_space<vmem>>, %arg2: memref<2x5xf32, #tpu.memory_space<vmem>>, %arg3: memref<48x128xf32, #tpu.memory_space<vmem>>, %arg4: memref<5x128xf32, #tpu.memory_space<vmem>>, %arg5: memref<2x128xf32, #tpu.memory_space<vmem>>, %arg6: memref<128x128xf32, #tpu.memory_space<vmem>>, %arg7: memref<128x2xf32, #tpu.memory_space<vmem>>, %arg8: memref<1x2xf32, #tpu.memory_space<vmem>>, %arg9: memref<2x2xf32, #tpu.memory_space<vmem>>) attributes {dimension_semantics = [#tpu.dimension_semantics<parallel>], iteration_bounds = array<i64: 1>, scalar_prefetch = 0 : i64, scratch_operands = 0 : i64, tpu.core_type = #tpu.core_type<tc>, window_params = [{transform_indices = @transform_0, window_bounds = array<i64: 2, 48>}, {transform_indices = @transform_1, window_bounds = array<i64: 2, 5>}, {pipeline_mode = #tpu.pipeline_mode<synchronous>, transform_indices = @transform_2, window_bounds = array<i64: 48, 128>}, {pipeline_mode = #tpu.pipeline_mode<synchronous>, transform_indices = @transform_3, window_bounds = array<i64: 5, 128>}, {pipeline_mode = #tpu.pipeline_mode<synchronous>, transform_indices = @transform_4, window_bounds = array<i64: 2, 128>}, {pipeline_mode = #tpu.pipeline_mode<synchronous>, transform_indices = @transform_5, window_bounds = array<i64: 128, 128>}, {pipeline_mode = #tpu.pipeline_mode<synchronous>, transform_indices = @transform_6, window_bounds = array<i64: 128, 2>}, {pipeline_mode = #tpu.pipeline_mode<synchronous>, transform_indices = @transform_7, window_bounds = array<i64: 1, 2>}, {transform_indices = @transform_8, window_bounds = array<i64: 2, 2>}]} {
    %c0 = arith.constant 0 : index
    %c0_0 = arith.constant 0 : index
    %0 = vector.load %arg1[%c0, %c0_0] : memref<2x48xf32, #tpu.memory_space<vmem>>, vector<2x48xf32>
    %c0_1 = arith.constant 0 : index
    %c0_2 = arith.constant 0 : index
    %1 = vector.load %arg2[%c0_1, %c0_2] : memref<2x5xf32, #tpu.memory_space<vmem>>, vector<2x5xf32>
    %c0_3 = arith.constant 0 : index
    %c0_4 = arith.constant 0 : index
    %2 = vector.load %arg5[%c0_3, %c0_4] : memref<2x128xf32, #tpu.memory_space<vmem>>, vector<2x128xf32>
    %3 = vector.extract_strided_slice %2 {offsets = [0, 0], sizes = [1, 128], strides = [1, 1]} : vector<2x128xf32> to vector<1x128xf32>
    %4 = vector.extract_strided_slice %2 {offsets = [1, 0], sizes = [1, 128], strides = [1, 1]} : vector<2x128xf32> to vector<1x128xf32>
    %c0_5 = arith.constant 0 : index
    %c0_6 = arith.constant 0 : index
    %5 = vector.load %arg3[%c0_5, %c0_6] : memref<48x128xf32, #tpu.memory_space<vmem>>, vector<48x128xf32>
    %cst = arith.constant dense<0.000000e+00> : vector<2x128xf32>
    %6 = tpu.matmul %0, %5, %cst {dimension_numbers = #tpu.dot_dimension_numbers<[1], [0], [0], [1], [0, 0, 1, 1], [], []>} : vector<2x48xf32>, vector<48x128xf32>, vector<2x128xf32> -> vector<2x128xf32>
    %c0_7 = arith.constant 0 : index
    %c0_8 = arith.constant 0 : index
    %7 = vector.load %arg4[%c0_7, %c0_8] : memref<5x128xf32, #tpu.memory_space<vmem>>, vector<5x128xf32>
    %cst_9 = arith.constant dense<0.000000e+00> : vector<2x128xf32>
    %8 = tpu.matmul %1, %7, %cst_9 {dimension_numbers = #tpu.dot_dimension_numbers<[1], [0], [0], [1], [0, 0, 1, 1], [], []>} : vector<2x5xf32>, vector<5x128xf32>, vector<2x128xf32> -> vector<2x128xf32>
    %9 = arith.addf %6, %8 : vector<2x128xf32>
    %10 = vector.broadcast %3 : vector<1x128xf32> to vector<2x128xf32>
    %11 = arith.addf %9, %10 : vector<2x128xf32>
    %12 = math.tanh %11 : vector<2x128xf32>
    %c0_10 = arith.constant 0 : index
    %c0_11 = arith.constant 0 : index
    %13 = vector.load %arg6[%c0_10, %c0_11] : memref<128x128xf32, #tpu.memory_space<vmem>>, vector<128x128xf32>
    %cst_12 = arith.constant dense<0.000000e+00> : vector<2x128xf32>
    %14 = tpu.matmul %12, %13, %cst_12 {dimension_numbers = #tpu.dot_dimension_numbers<[1], [0], [0], [1], [0, 0, 1, 1], [], []>} : vector<2x128xf32>, vector<128x128xf32>, vector<2x128xf32> -> vector<2x128xf32>
    %15 = vector.broadcast %4 : vector<1x128xf32> to vector<2x128xf32>
    %16 = arith.addf %14, %15 : vector<2x128xf32>
    %17 = math.tanh %16 : vector<2x128xf32>
    %c0_13 = arith.constant 0 : index
    %c0_14 = arith.constant 0 : index
    %18 = vector.load %arg7[%c0_13, %c0_14] : memref<128x2xf32, #tpu.memory_space<vmem>>, vector<128x2xf32>
    %cst_15 = arith.constant dense<0.000000e+00> : vector<2x2xf32>
    %19 = tpu.matmul %17, %18, %cst_15 {dimension_numbers = #tpu.dot_dimension_numbers<[1], [0], [0], [1], [0, 0, 1, 1], [], []>} : vector<2x128xf32>, vector<128x2xf32>, vector<2x2xf32> -> vector<2x2xf32>
    %c0_16 = arith.constant 0 : index
    %c0_17 = arith.constant 0 : index
    %20 = vector.load %arg8[%c0_16, %c0_17] : memref<1x2xf32, #tpu.memory_space<vmem>>, vector<1x2xf32>
    %21 = vector.broadcast %20 : vector<1x2xf32> to vector<2x2xf32>
    %22 = arith.addf %19, %21 : vector<2x2xf32>
    %c0_18 = arith.constant 0 : index
    %c0_19 = arith.constant 0 : index
    %23 = vector.load %arg9[%c0_18, %c0_19] : memref<2x2xf32, #tpu.memory_space<vmem>>, vector<2x2xf32>
    tpu.vector_store %arg9[%c0_18, %c0_19], %22 {strides = array<i32>} : memref<2x2xf32, #tpu.memory_space<vmem>>, vector<2x2xf32>,
    return
  }
  func.func @transform_0(%arg0: i32) -> (i32, i32) {
    %c0_i32 = arith.constant 0 : i32
    %c0_i32_0 = arith.constant 0 : i32
    return %arg0, %c0_i32 : i32, i32
  }
  func.func @transform_1(%arg0: i32) -> (i32, i32) {
    %c0_i32 = arith.constant 0 : i32
    %c0_i32_0 = arith.constant 0 : i32
    return %arg0, %c0_i32 : i32, i32
  }
  func.func @transform_2(%arg0: i32) -> (i32, i32) {
    %c0_i32 = arith.constant 0 : i32
    %c0_i32_0 = arith.constant 0 : i32
    %c0_i32_1 = arith.constant 0 : i32
    return %c0_i32, %c0_i32_0 : i32, i32
  }
  func.func @transform_3(%arg0: i32) -> (i32, i32) {
    %c0_i32 = arith.constant 0 : i32
    %c0_i32_0 = arith.constant 0 : i32
    %c0_i32_1 = arith.constant 0 : i32
    return %c0_i32, %c0_i32_0 : i32, i32
  }
  func.func @transform_4(%arg0: i32) -> (i32, i32) {
    %c0_i32 = arith.constant 0 : i32
    %c0_i32_0 = arith.constant 0 : i32
    %c0_i32_1 = arith.constant 0 : i32
    return %c0_i32, %c0_i32_0 : i32, i32
  }
  func.func @transform_5(%arg0: i32) -> (i32, i32) {
    %c0_i32 = arith.constant 0 : i32
    %c0_i32_0 = arith.constant 0 : i32
    %c0_i32_1 = arith.constant 0 : i32
    return %c0_i32, %c0_i32_0 : i32, i32
  }
  func.func @transform_6(%arg0: i32) -> (i32, i32) {
    %c0_i32 = arith.constant 0 : i32
    %c0_i32_0 = arith.constant 0 : i32
    %c0_i32_1 = arith.constant 0 : i32
    return %c0_i32, %c0_i32_0 : i32, i32
  }
  func.func @transform_7(%arg0: i32) -> (i32, i32) {
    %c0_i32 = arith.constant 0 : i32
    %c0_i32_0 = arith.constant 0 : i32
    %c0_i32_1 = arith.constant 0 : i32
    return %c0_i32, %c0_i32_0 : i32, i32
  }
  func.func @transform_8(%arg0: i32) -> (i32, i32) {
    %c0_i32 = arith.constant 0 : i32
    %c0_i32_0 = arith.constant 0 : i32
    return %arg0, %c0_i32 : i32, i32
  }
}

</mosaic_0001>

<llo_original>
// kernel: tpu_custom_call.1
$region0: #{tpu_custom_call.1}
  #allocation0 [shape = 'u32[]', space=smem, size = 0x4, offset = 0x4, fixed_abs, tag = 'smem constant byte address 0x4 - core index']
  #allocation1 [shape = 'u32[72,128]{1,0:T(1,128)}', space=vmem, size = 0x9000, scoped, tag = 'internal scratch']
  %s0 = inlined_call_operand.vmem [shape: f32[2,48], index: 0, kind: input, shape index: {}]
  %s1 = inlined_call_operand.hbm [shape: f32[2,5], index: 1, kind: input, shape index: {}]
  %s2 = inlined_call_operand.hbm [shape: f32[48,128], index: 2, kind: input, shape index: {}]
  %s3 = inlined_call_operand.hbm [shape: f32[5,128], index: 3, kind: input, shape index: {}]
  %s4 = inlined_call_operand.hbm [shape: f32[2,128], index: 4, kind: input, shape index: {}]
  %s5 = inlined_call_operand.vmem [shape: f32[128,128], index: 5, kind: input, shape index: {}]
  %s6 = inlined_call_operand.vmem [shape: f32[128,2], index: 6, kind: input, shape index: {}]
  %s7 = inlined_call_operand.vmem [shape: f32[1,2], index: 7, kind: input, shape index: {}]
  %s8 = inlined_call_operand.hbm [shape: f32[2,2], index: 8, kind: output, shape index: {}]
  %s9 = sld [smem:[#allocation0]]
  $region58: #{tpu_custom_call.1} parent=0
    _
  %s11 = ssub.s32 1, %s9
  %s12 = scalar_select 0, %s11, %s9
  $region1: #{tpu_custom_call.1} parent=0
    #allocation2 [shape = 'u8[1024]{0}', space=vmem, size = 0x400, scoped, tag = 'input window, operand 1, single buffered']
    #allocation3 [shape = 's32[1]{0}', space=sflag, size = 0x4, scoped, tag = 'scoped memory for tpu_custom_call.1']
    #allocation4 [shape = 's32[1]{0}', space=sflag, size = 0x4, scoped, tag = 'scoped memory for tpu_custom_call.1']
    #allocation5 [shape = 'u8[24576]{0}', space=vmem, size = 0x6000, scoped, tag = 'input window, operand 2, single buffered']
    #allocation6 [shape = 's32[1]{0}', space=sflag, size = 0x4, scoped, tag = 'scoped memory for tpu_custom_call.1']
    #allocation7 [shape = 'u8[4096]{0}', space=vmem, size = 0x1000, scoped, tag = 'input window, operand 3, single buffered']
    #allocation8 [shape = 'u8[1024]{0}', space=vmem, size = 0x400, scoped, tag = 'input window, operand 4, single buffered']
    #allocation9 [shape = 's32[1]{0}', space=sflag, size = 0x4, scoped, tag = 'scoped memory for tpu_custom_call.1']
    #allocation10 [shape = 'u8[1024]{0}', space=vmem, size = 0x400, scoped, tag = 'output window, operand 0, single buffered']
    %13 = vsyncpa [#allocation3], 0
    %14 = vsyncpa [#allocation6], 0
    %15 = vsyncpa [#allocation9], 0
    %16 = vsyncpa [#allocation4], 0
    // Predicated region
    $region2: #{tpu_custom_call.1} parent=1 // pred_check
      _
    $region3: #{tpu_custom_call.1} parent=1 // pred_check_branch
      %18 = sbr.rel (0) target = $region5
    $region4: #{tpu_custom_call.1} parent=1 // pred_region
      _
    $region5: #{tpu_custom_call.1} parent=1 // pred_fallthru
      _
    // Predicated region
    $region6: #{tpu_custom_call.1} parent=1 // pred_check
      _
    $region7: #{tpu_custom_call.1} parent=1 // pred_check_branch
      %20 = sbr.rel (0) target = $region9
    $region8: #{tpu_custom_call.1} parent=1 // pred_region
      %22 = vsyncadd [#allocation3], 0
      %s24 = sshll.u32 %s1, 4
      %s25 = int_to_ptr.hbm [resolvable:$true] %s24
      %s26 = sshll.u32 [#allocation2], 4
      %s27 = int_to_ptr.vmem [resolvable:$true] %s26
      %29 = dma.hbm_to_vmem [thread:$0]  %s25, 32, %s27, [#allocation3]
    $region9: #{tpu_custom_call.1} parent=1 // pred_fallthru
      _
    // Predicated region
    $region10: #{tpu_custom_call.1} parent=1 // pred_check
      _
    $region11: #{tpu_custom_call.1} parent=1 // pred_check_branch
      %31 = sbr.rel (0) target = $region13
    $region12: #{tpu_custom_call.1} parent=1 // pred_region
      %33 = vsyncadd [#allocation6], 0
      %s34 = sshll.u32 %s2, 4
      %s35 = int_to_ptr.hbm [resolvable:$true] %s34
      %s36 = sshll.u32 [#allocation5], 4
      %s37 = int_to_ptr.vmem [resolvable:$true] %s36
      %42 = dma.hbm_to_vmem [thread:$0]  %s35, 768, %s37, [#allocation6], 128, 128, 8
    $region13: #{tpu_custom_call.1} parent=1 // pred_fallthru
      _
    // Predicated region
    $region14: #{tpu_custom_call.1} parent=1 // pred_check
      _
    $region15: #{tpu_custom_call.1} parent=1 // pred_check_branch
      %44 = sbr.rel (0) target = $region17
    $region16: #{tpu_custom_call.1} parent=1 // pred_region
      %46 = vsyncadd [#allocation6], 0
      %s48 = sshll.u32 %s3, 4
      %s49 = int_to_ptr.hbm [resolvable:$true] %s48
      %s50 = sshll.u32 [#allocation7], 4
      %s51 = int_to_ptr.vmem [resolvable:$true] %s50
      %53 = dma.hbm_to_vmem [thread:$0]  %s49, 128, %s51, [#allocation6]
    $region17: #{tpu_custom_call.1} parent=1 // pred_fallthru
      _
    // Predicated region
    $region18: #{tpu_custom_call.1} parent=1 // pred_check
      _
    $region19: #{tpu_custom_call.1} parent=1 // pred_check_branch
      %55 = sbr.rel (0) target = $region21
    $region20: #{tpu_custom_call.1} parent=1 // pred_region
      %57 = vsyncadd [#allocation9], 0
      %s59 = sshll.u32 %s4, 4
      %s60 = int_to_ptr.hbm [resolvable:$true] %s59
      %s61 = sshll.u32 [#allocation8], 4
      %s62 = int_to_ptr.vmem [resolvable:$true] %s61
      %64 = dma.hbm_to_vmem [thread:$0]  %s60, 32, %s62, [#allocation9]
    $region21: #{tpu_custom_call.1} parent=1 // pred_fallthru
      _
    // Predicated region
    $region22: #{tpu_custom_call.1} parent=1 // pred_check
      _
    $region23: #{tpu_custom_call.1} parent=1 // pred_check_branch
      %66 = sbr.rel (0) target = $region25
    $region24: #{tpu_custom_call.1} parent=1 // pred_region
      _
    $region25: #{tpu_custom_call.1} parent=1 // pred_fallthru
      _
    // Predicated region
    $region26: #{tpu_custom_call.1} parent=1 // pred_check
      _
    $region27: #{tpu_custom_call.1} parent=1 // pred_check_branch
      %68 = sbr.rel (0) target = $region29
    $region28: #{tpu_custom_call.1} parent=1 // pred_region
      _
    $region29: #{tpu_custom_call.1} parent=1 // pred_fallthru
      _
    // Predicated region
    $region30: #{tpu_custom_call.1} parent=1 // pred_check
      _
    $region31: #{tpu_custom_call.1} parent=1 // pred_check_branch
      %70 = sbr.rel (0) target = $region33
    $region32: #{tpu_custom_call.1} parent=1 // pred_region
      _
    $region33: #{tpu_custom_call.1} parent=1 // pred_fallthru
      _
    // Predicated region
    $region34: #{tpu_custom_call.1} parent=1 // pred_check
      _
    $region35: #{tpu_custom_call.1} parent=1 // pred_check_branch
      %72 = sbr.rel (0) target = $region37
    $region36: #{tpu_custom_call.1} parent=1 // pred_region
      %74 = dma.done [#allocation3], 32
    $region37: #{tpu_custom_call.1} parent=1 // pred_fallthru
      _
    // Predicated region
    $region38: #{tpu_custom_call.1} parent=1 // pred_check
      _
    $region39: #{tpu_custom_call.1} parent=1 // pred_check_branch
      %76 = sbr.rel (0) target = $region41
    $region40: #{tpu_custom_call.1} parent=1 // pred_region
      %78 = dma.done [#allocation6], 768
    $region41: #{tpu_custom_call.1} parent=1 // pred_fallthru
      _
    // Predicated region
    $region42: #{tpu_custom_call.1} parent=1 // pred_check
      _
    $region43: #{tpu_custom_call.1} parent=1 // pred_check_branch
      %80 = sbr.rel (0) target = $region45
    $region44: #{tpu_custom_call.1} parent=1 // pred_region
      %82 = dma.done [#allocation6], 128
    $region45: #{tpu_custom_call.1} parent=1 // pred_fallthru
      _
    // Predicated region
    $region46: #{tpu_custom_call.1} parent=1 // pred_check
      _
    $region47: #{tpu_custom_call.1} parent=1 // pred_check_branch
      %84 = sbr.rel (0) target = $region49
    $region48: #{tpu_custom_call.1} parent=1 // pred_region
      %86 = dma.done [#allocation9], 32
    $region49: #{tpu_custom_call.1} parent=1 // pred_fallthru
      _
    %v87 = vld [vmem:[%s0] sm:$0x3]
    %v88 = vld [vmem:[#allocation2] sm:$0x3]
    %v89 = vld [vmem:[#allocation8] sm:$0x3]
    %v90 = vld [vmem:[#allocation5] sm:$0xff]
    %v91 = vld [vmem:[#allocation5 + $0x8] sm:$0xff]
    %v92 = vld [vmem:[#allocation5 + $0x10] sm:$0xff]
    %v93 = vld [vmem:[#allocation5 + $0x18] sm:$0xff]
    %v94 = vld [vmem:[#allocation5 + $0x20] sm:$0xff]
    %v95 = vld [vmem:[#allocation5 + $0x28] sm:$0xff]
    %v96 = vld [vmem:[#allocation7] sm:$0x1f]
    %vm97 = vcmask 39936
    %v99 = vsel %vm97, %v88, 0
    %vm101 = vcmask 1044480
    %v103 = vsel %vm101, %v96, 0
    %105 = vmatpush.msra.mxu0 0.0
    %106 = vmatpush.msra.mxu0 0.0
    %107 = vmatpush.msra.mxu0 0.0
    %108 = vmatpush.msra.mxu0 0.0
    %109 = vmatpush.msra.mxu0 0.0
    %110 = vmatpush.msra.mxu0 0.0
    %111 = vmatpush.msra.mxu0 0.0
    %112 = vmatpush.msra.mxu0 0.0
    %113 = vmatpush.msra.mxu0 0.0
    %114 = vmatpush.msra.mxu0 0.0
    %115 = vmatpush.msra.mxu0 0.0
    %116 = vmatpush.msra.mxu0 0.0
    %117 = vmatpush.msra.mxu0 0.0
    %118 = vmatpush.msra.mxu0 0.0
    %119 = vmatpush.msra.mxu0 0.0
    %120 = vmatpush.msra.mxu0 %v103
    %121 = vmatmul.f32.gmra.mxu0 %v99
    %v122 = vpop.f32.mrf.mxu0
    %v123 = vadd.f32 0.0, %v122
    %124 = vdwg.mxu0
    %vm125 = vcmask 392192
    %v127 = vsel %vm125, %v87, 0
    %129 = vmatpush.msra.mxu0 0.0
    %130 = vmatpush.msra.mxu0 0.0
    %131 = vmatpush.msra.mxu0 0.0
    %132 = vmatpush.msra.mxu0 0.0
    %133 = vmatpush.msra.mxu0 0.0
    %134 = vmatpush.msra.mxu0 0.0
    %135 = vmatpush.msra.mxu0 0.0
    %136 = vmatpush.msra.mxu0 0.0
    %137 = vmatpush.msra.mxu0 0.0
    %138 = vmatpush.msra.mxu0 0.0
    %139 = vmatpush.msra.mxu0 %v95
    %140 = vmatpush.msra.mxu0 %v94
    %141 = vmatpush.msra.mxu0 %v93
    %142 = vmatpush.msra.mxu0 %v92
    %143 = vmatpush.msra.mxu0 %v91
    %144 = vmatpush.msra.mxu0 %v90
    %145 = vmatmul.f32.gmra.mxu0 %v127
    %v146 = vpop.f32.mrf.mxu0
    %v147 = vadd.f32 %v123, %v146
    %148 = vdwg.mxu0
    %v149 = vperm.slane %v89, 0
    %v150 = vadd.f32 %v147, %v149
    %v151 = vtanh.pop %v150
    %v152 = vld [vmem:[%s5] sm:$0xff]
    %v153 = vld [vmem:[%s5 + $0x8] sm:$0xff]
    %v154 = vld [vmem:[%s5 + $0x10] sm:$0xff]
    %v155 = vld [vmem:[%s5 + $0x18] sm:$0xff]
    %v156 = vld [vmem:[%s5 + $0x20] sm:$0xff]
    %v157 = vld [vmem:[%s5 + $0x28] sm:$0xff]
    %v158 = vld [vmem:[%s5 + $0x30] sm:$0xff]
    %v159 = vld [vmem:[%s5 + $0x38] sm:$0xff]
    %v160 = vld [vmem:[%s5 + $0x40] sm:$0xff]
    %v161 = vld [vmem:[%s5 + $0x48] sm:$0xff]
    %v162 = vld [vmem:[%s5 + $0x50] sm:$0xff]
    %v163 = vld [vmem:[%s5 + $0x58] sm:$0xff]
    %v164 = vld [vmem:[%s5 + $0x60] sm:$0xff]
    %v165 = vld [vmem:[%s5 + $0x68] sm:$0xff]
    %v166 = vld [vmem:[%s5 + $0x70] sm:$0xff]
    %v167 = vld [vmem:[%s5 + $0x78] sm:$0xff]
    %v168 = vperm.slane %v89, 1
    %169 = vmatpush.msra.mxu0 %v167
    %170 = vmatpush.msra.mxu0 %v166
    %171 = vmatpush.msra.mxu0 %v165
    %172 = vmatpush.msra.mxu0 %v164
    %173 = vmatpush.msra.mxu0 %v163
    %174 = vmatpush.msra.mxu0 %v162
    %175 = vmatpush.msra.mxu0 %v161
    %176 = vmatpush.msra.mxu0 %v160
    %177 = vmatpush.msra.mxu0 %v159
    %178 = vmatpush.msra.mxu0 %v158
    %179 = vmatpush.msra.mxu0 %v157
    %180 = vmatpush.msra.mxu0 %v156
    %181 = vmatpush.msra.mxu0 %v155
    %182 = vmatpush.msra.mxu0 %v154
    %183 = vmatpush.msra.mxu0 %v153
    %184 = vmatpush.msra.mxu0 %v152
    %185 = vmatmul.f32.gmra.mxu0 %v151
    %v186 = vpop.f32.mrf.mxu0
    %v187 = vadd.f32 %v168, %v186
    %188 = vdwg.mxu0
    %v189 = vtanh.pop %v187
    %v190 = vld [vmem:[%s6] sm:$0xff]
    %v191 = vld [vmem:[%s6 + $0x8] sm:$0xff]
    %v192 = vld [vmem:[%s6 + $0x10] sm:$0xff]
    %v193 = vld [vmem:[%s6 + $0x18] sm:$0xff]
    %v194 = vld [vmem:[%s6 + $0x20] sm:$0xff]
    %v195 = vld [vmem:[%s6 + $0x28] sm:$0xff]
    %v196 = vld [vmem:[%s6 + $0x30] sm:$0xff]
    %v197 = vld [vmem:[%s6 + $0x38] sm:$0xff]
    %v198 = vld [vmem:[%s6 + $0x40] sm:$0xff]
    %v199 = vld [vmem:[%s6 + $0x48] sm:$0xff]
    %v200 = vld [vmem:[%s6 + $0x50] sm:$0xff]
    %v201 = vld [vmem:[%s6 + $0x58] sm:$0xff]
    %v202 = vld [vmem:[%s6 + $0x60] sm:$0xff]
    %v203 = vld [vmem:[%s6 + $0x68] sm:$0xff]
    %v204 = vld [vmem:[%s6 + $0x70] sm:$0xff]
    %v205 = vld [vmem:[%s6 + $0x78] sm:$0xff]
    %v206 = vld [vmem:[%s7] sm:$0x1]
    %v208 = vperm.slane %v206, 0
    %210 = vmatpush.msra.mxu0 %v205
    %211 = vmatpush.msra.mxu0 %v204
    %212 = vmatpush.msra.mxu0 %v203
    %213 = vmatpush.msra.mxu0 %v202
    %214 = vmatpush.msra.mxu0 %v201
    %215 = vmatpush.msra.mxu0 %v200
    %216 = vmatpush.msra.mxu0 %v199
    %217 = vmatpush.msra.mxu0 %v198
    %218 = vmatpush.msra.mxu0 %v197
    %219 = vmatpush.msra.mxu0 %v196
    %220 = vmatpush.msra.mxu0 %v195
    %221 = vmatpush.msra.mxu0 %v194
    %222 = vmatpush.msra.mxu0 %v193
    %223 = vmatpush.msra.mxu0 %v192
    %224 = vmatpush.msra.mxu0 %v191
    %225 = vmatpush.msra.mxu0 %v190
    %226 = vmatmul.f32.gmra.mxu0 %v189
    %v227 = vpop.f32.mrf.mxu0
    %v228 = vadd.f32 %v208, %v227
    %229 = vdwg.mxu0
    %vm230 = vcmask 9216
    %231 = vst.msk [vmem:[#allocation10] sm:$0x3] %vm230, %v228
    // Predicated region
    $region50: #{tpu_custom_call.1} parent=1 // pred_check
      _
    $region51: #{tpu_custom_call.1} parent=1 // pred_check_branch
      %233 = sbr.rel (0) target = $region53
    $region52: #{tpu_custom_call.1} parent=1 // pred_region
      %235 = vsyncadd [#allocation4], 0
      %s237 = sshll.u32 [#allocation10], 4
      %s238 = int_to_ptr.vmem [resolvable:$true] %s237
      %s239 = sshll.u32 %s8, 4
      %s240 = int_to_ptr.hbm [resolvable:$true] %s239
      %242 = dma.vmem_to_hbm [thread:$0]  %s238, 32, %s240, [#allocation4]
    $region53: #{tpu_custom_call.1} parent=1 // pred_fallthru
      _
    // Predicated region
    $region54: #{tpu_custom_call.1} parent=1 // pred_check
      _
    $region55: #{tpu_custom_call.1} parent=1 // pred_check_branch
      %244 = sbr.rel (0) target = $region57
    $region56: #{tpu_custom_call.1} parent=1 // pred_region
      %246 = dma.done [#allocation4], 32
    $region57: #{tpu_custom_call.1} parent=1 // pred_fallthru
      _
    %247 = vsyncpa [#allocation3], 1
    %248 = vsyncpa [#allocation6], 1
    %249 = vsyncpa [#allocation9], 1
    %250 = vsyncpa [#allocation4], 1

</llo_original>
